<compile_context>
chip_gen: v5e
topology: v5e:2x2
jax: 0.10.0
libtpu: 0.0.40
codegen_flags: <defaults>
</compile_context>

<pallas_src>
import functools

import jax
import jax.numpy as jnp
from jax.experimental import pallas as pl
from jax.experimental.pallas import tpu as pltpu


def _round_up(v: int, m: int) -> int:
    return ((v + m - 1) // m) * m


def _make_kernel(num_layers: int):
    """Fused FC-stack + fused-head kernel for a static number of layers."""

    def kernel(*refs):
        # refs layout: x, ymask, w_0..w_{L-1}, b_layers, w_head, b_head, out
        x_ref, ymask_ref = refs[0], refs[1]
        w_refs = refs[2:2 + num_layers]
        b_layers_ref = refs[2 + num_layers]
        w_head_ref = refs[3 + num_layers]
        b_head_ref = refs[4 + num_layers]
        out_ref = refs[5 + num_layers]

        h = x_ref[...].astype(jnp.float32)
        # Hidden FC stack with ReLU (num_layers is small, statically unrolled).
        for i, w_ref in enumerate(w_refs):
            h = jnp.dot(h.astype(w_ref.dtype), w_ref[...],
                        preferred_element_type=jnp.float32)
            h = jnp.maximum(h + b_layers_ref[i:i + 1, :].astype(jnp.float32), 0.0)
            # TODO(synk): on v6e/v7x keep h in bf16 between layers (bf16-native
            # VPU); kept f32 here for v5e friendliness + exact-match demo.

        # Single fused head matmul over lane-dense, 128-aligned columns
        # [mu_latent | mu_cond | lv_latent | lv_cond | zero-pad], bias included
        # before the conditional mask (matches the PyTorch forward).
        out = jnp.dot(h.astype(w_head_ref.dtype), w_head_ref[...],
                      preferred_element_type=jnp.float32)
        out = out + b_head_ref[...].astype(jnp.float32)
        out_ref[...] = (out * ymask_ref[...].astype(jnp.float32)).astype(out_ref.dtype)

    return kernel


def prepare_params(raw, *, latent_dim, cond_dim, num_layers,
                   weights_dtype=jnp.float32, lane_align=128):
    """One-time preprocessing (NOT per forward call):
       * split interleaved mu/logvar columns (torch .view(-1, L, 2).unbind(-1)),
       * fuse all four head matmuls into ONE wide, zero-padded head,
       * zero-pad every matmul K/N dim to a multiple of `lane_align`,
       * pack per-layer biases into a single (num_layers, hidden_pad) array,
       * optionally cast weights to bf16 (f32 accumulation stays in-kernel)."""
    hidden = raw["w0"].shape[1]
    hidden_pad = _round_up(hidden, lane_align)
    out_dim = latent_dim + cond_dim
    head_pad = _round_up(2 * out_dim, lane_align)

    prepped = {}
    b_rows = []
    for i in range(num_layers):
        w = raw[f"w{i}"]
        fan_in = w.shape[0]
        fan_in_pad = _round_up(fan_in, lane_align)
        w_p = jnp.zeros((fan_in_pad, hidden_pad), weights_dtype)
        w_p = w_p.at[:fan_in, :hidden].set(w.astype(weights_dtype))
        prepped[f"w{i}"] = w_p
        b_row = jnp.zeros((hidden_pad,), jnp.float32)
        b_row = b_row.at[:hidden].set(raw[f"b{i}"].reshape(-1).astype(jnp.float32))
        b_rows.append(b_row)
    prepped["b_layers"] = jnp.stack(b_rows, axis=0)  # (num_layers, hidden_pad)

    # Split interleaved mu/logvar columns, then fuse all heads into one.
    w_ml, b_ml = raw["w_ml"], raw["b_ml"].reshape(-1)
    w_mu, w_lv = w_ml[:, 0::2], w_ml[:, 1::2]
    b_mu, b_lv = b_ml[0::2], b_ml[1::2]
    w_head = jnp.concatenate([w_mu, raw["w_cm"], w_lv, raw["w_cv"]], axis=1)
    b_head = jnp.concatenate([b_mu, raw["b_cm"].reshape(-1),
                              b_lv, raw["b_cv"].reshape(-1)], axis=0)

    w_head_p = jnp.zeros((hidden_pad, head_pad), weights_dtype)
    w_head_p = w_head_p.at[:hidden, :2 * out_dim].set(w_head.astype(weights_dtype))
    b_head_p = jnp.zeros((1, head_pad), jnp.float32)
    b_head_p = b_head_p.at[0, :2 * out_dim].set(b_head.astype(jnp.float32))
    prepped["w_head"] = w_head_p
    prepped["b_head"] = b_head_p
    return prepped


def cond_mask_encoder_fc(x, y, prepped, *, latent_dim, cond_dim, num_layers,
                         batch_tile=512):
    """Forward pass. `prepped` must come from prepare_params()."""
    B, in_dim = x.shape
    out_dim = latent_dim + cond_dim
    in_pad = prepped["w0"].shape[0]
    hidden_pad = prepped["w_head"].shape[0]
    head_pad = prepped["w_head"].shape[1]

    # ---- batch tiling ----
    tb_cap = _round_up(B, 8)                      # smallest tile covering B
    tb = min(_round_up(batch_tile, 8), tb_cap)
    if tb == tb_cap and tb >= 16:
        # Keep >= 2 grid steps: v7x megacore sharding of the "parallel" axis
        # plus activation-DMA / compute overlap.
        tb = _round_up(tb_cap // 2, 8)
    B_pad = _round_up(B, tb)
    grid = (B_pad // tb,)

    # ---- pad streamed activations ----
    xp = jnp.pad(x, ((0, B_pad - B), (0, in_pad - in_dim)))
    # Mask over the fused head columns: ones over mu_latent, y over mu_cond,
    # ones over logvar + zero-padded columns.
    ymask = jnp.concatenate(
        [jnp.ones((B, latent_dim), jnp.float32),
         y.astype(jnp.float32),
         jnp.ones((B, head_pad - out_dim), jnp.float32)], axis=-1)
    ymask = jnp.pad(ymask, ((0, B_pad - B), (0, 0)), constant_values=1.0)

    weights = [prepped[f"w{i}"] for i in range(num_layers)]
    weights += [prepped["b_layers"], prepped["w_head"], prepped["b_head"]]

    def batch_spec(feat):
        return pl.BlockSpec((tb, feat), lambda i: (i, 0))

    def resident_spec(arr, mode):
        if mode is None:
            return pl.BlockSpec(arr.shape, lambda i: (0,) * arr.ndim)
        return pl.BlockSpec(arr.shape, lambda i: (0,) * arr.ndim,
                            pipeline_mode=mode)

    # Static byte budgets (weights may be single- or double-buffered).
    w_bytes = sum(int(w.size) * w.dtype.itemsize for w in weights)
    act_bytes = 2 * tb * (in_pad + 2 * head_pad) * 4   # x, ymask, out (2-buf)
    live_bytes = 4 * tb * hidden_pad * 4               # live h + compiler temps
    try:
        vmem_cap = pltpu.get_tpu_info().vmem_capacity_bytes
    except Exception:                                  # conservative: v7x per-TC
        vmem_cap = 64 << 20

    def _call(single_buffer_weights: bool):
        mode = pl.Buffered(1) if single_buffer_weights else None
        wf = 1 if single_buffer_weights else 2
        vmem_limit = wf * w_bytes + act_bytes + live_bytes + (16 << 20)
        vmem_limit = min(max(vmem_limit, 32 << 20), int(0.75 * vmem_cap))
        in_specs = [batch_spec(in_pad), batch_spec(head_pad)]
        in_specs += [resident_spec(w, mode) for w in weights]
        return pl.pallas_call(
            _make_kernel(num_layers),
            grid=grid,
            out_shape=jax.ShapeDtypeStruct((B_pad, head_pad), x.dtype),
            in_specs=in_specs,
            out_specs=batch_spec(head_pad),
            compiler_params=pltpu.CompilerParams(
                dimension_semantics=("parallel",),
                vmem_limit_bytes=vmem_limit),
        )(xp, ymask, *weights)

    try:
        # Single-buffer the constant-index resident weights (halves their VMEM).
        out = _call(True)
    except Exception:  # pragma: no cover - jax without pipeline_mode support
        out = _call(False)

    mu = out[:B, :out_dim]
    logvar = out[:B, out_dim:2 * out_dim]
    return mu, logvar


def init_params(key, input_dim, cond_dim, latent_dim, hidden_dim, num_layers):
    """Deterministic init mimicking nn.Linear's U(-1/sqrt(fan_in), 1/sqrt(fan_in)).
    Weights stored as (in_features, out_features); biases as (1, out_features)."""
    params = {}

    def linear(k, fan_in, fan_out):
        kw, kb = jax.random.split(k)
        bound = 1.0 / jnp.sqrt(fan_in)
        w = jax.random.uniform(kw, (fan_in, fan_out), jnp.float32, -bound, bound)
        b = jax.random.uniform(kb, (1, fan_out), jnp.float32, -bound, bound)
        return w, b

    keys = jax.random.split(key, num_layers + 3)
    for i in range(num_layers):
        fan_in = input_dim if i == 0 else hidden_dim
        params[f"w{i}"], params[f"b{i}"] = linear(keys[i], fan_in, hidden_dim)
    params["w_ml"], params["b_ml"] = linear(keys[num_layers], hidden_dim,
                                            latent_dim * 2)
    params["w_cm"], params["b_cm"] = linear(keys[num_layers + 1], hidden_dim,
                                            cond_dim)
    params["w_cv"], params["b_cv"] = linear(keys[num_layers + 2], hidden_dim,
                                            cond_dim)
    return params


def reference_forward(x, y, params, *, latent_dim, num_layers):
    """Pure-JAX reference mirroring the PyTorch forward."""
    h = x
    for i in range(num_layers):
        h = jnp.maximum(h @ params[f"w{i}"] + params[f"b{i}"], 0.0)
    ml = h @ params["w_ml"] + params["b_ml"]
    ml = ml.reshape(-1, latent_dim, 2)
    mu_lat, lv_lat = ml[..., 0], ml[..., 1]
    mu_emb = (h @ params["w_cm"] + params["b_cm"]) * y
    lv_emb = h @ params["w_cv"] + params["b_cv"]
    mu = jnp.concatenate([mu_lat, mu_emb], axis=-1)
    logvar = jnp.concatenate([lv_lat, lv_emb], axis=-1)
    return mu, logvar


if __name__ == "__main__":
    B = 2
    input_dim = 32
    cond_dim = 8
    latent_dim = 10
    hidden_dim = 32
    num_layers = 1

    key = jax.random.PRNGKey(0)
    kx, ky, kp = jax.random.split(key, 3)
    x = jax.random.normal(kx, (B, input_dim), jnp.float32)
    y = jax.random.normal(ky, (B, cond_dim), jnp.float32)
    params = init_params(kp, input_dim, cond_dim, latent_dim, hidden_dim,
                         num_layers)

    # One-time parameter preprocessing (column split + head fusion + padding).
    # On v6e/v7x, pass weights_dtype=jnp.bfloat16 (loosen tolerances accordingly).
    prepped = prepare_params(params, latent_dim=latent_dim, cond_dim=cond_dim,
                             num_layers=num_layers, weights_dtype=jnp.float32)

    run = functools.partial(cond_mask_encoder_fc, latent_dim=latent_dim,
                            cond_dim=cond_dim, num_layers=num_layers)
    mu, logvar = run(x, y, prepped)
    jax.block_until_ready((mu, logvar))

    mu_ref, logvar_ref = reference_forward(x, y, params,
                                           latent_dim=latent_dim,
                                           num_layers=num_layers)
    assert mu.shape == (B, latent_dim + cond_dim)
    assert logvar.shape == (B, latent_dim + cond_dim)
    assert jnp.allclose(mu, mu_ref, atol=1e-5, rtol=1e-5)
    assert jnp.allclose(logvar, logvar_ref, atol=1e-5, rtol=1e-5)

    print("KERNEL_OK")
</pallas_src>

<mosaic_0001>
module attributes {stable_mosaic.version = 11 : i64} {
  func.func @kernel(%arg0: i32, %arg1: memref<8x128xf32, #tpu.memory_space<vmem>>, %arg2: memref<8x128xf32, #tpu.memory_space<vmem>>, %arg3: memref<128x128xf32, #tpu.memory_space<vmem>>, %arg4: memref<1x128xf32, #tpu.memory_space<vmem>>, %arg5: memref<128x128xf32, #tpu.memory_space<vmem>>, %arg6: memref<1x128xf32, #tpu.memory_space<vmem>>, %arg7: memref<8x128xf32, #tpu.memory_space<vmem>>) attributes {dimension_semantics = [#tpu.dimension_semantics<parallel>], iteration_bounds = array<i64: 1>, scalar_prefetch = 0 : i64, scratch_operands = 0 : i64, tpu.core_type = #tpu.core_type<tc>, window_params = [{transform_indices = @transform_0, window_bounds = array<i64: 8, 128>}, {transform_indices = @transform_1, window_bounds = array<i64: 8, 128>}, {pipeline_mode = #tpu.pipeline_mode<synchronous>, transform_indices = @transform_2, window_bounds = array<i64: 128, 128>}, {pipeline_mode = #tpu.pipeline_mode<synchronous>, transform_indices = @transform_3, window_bounds = array<i64: 1, 128>}, {pipeline_mode = #tpu.pipeline_mode<synchronous>, transform_indices = @transform_4, window_bounds = array<i64: 128, 128>}, {pipeline_mode = #tpu.pipeline_mode<synchronous>, transform_indices = @transform_5, window_bounds = array<i64: 1, 128>}, {transform_indices = @transform_6, window_bounds = array<i64: 8, 128>}]} {
    %c0 = arith.constant 0 : index
    %c0_0 = arith.constant 0 : index
    %0 = vector.load %arg1[%c0, %c0_0] : memref<8x128xf32, #tpu.memory_space<vmem>>, vector<8x128xf32>
    %c0_1 = arith.constant 0 : index
    %c0_2 = arith.constant 0 : index
    %1 = vector.load %arg3[%c0_1, %c0_2] : memref<128x128xf32, #tpu.memory_space<vmem>>, vector<128x128xf32>
    %cst = arith.constant dense<0.000000e+00> : vector<8x128xf32>
    %2 = tpu.matmul %0, %1, %cst {dimension_numbers = #tpu.dot_dimension_numbers<[1], [0], [0], [1], [0, 0, 1, 1], [], []>} : vector<8x128xf32>, vector<128x128xf32>, vector<8x128xf32> -> vector<8x128xf32>
    %c0_3 = arith.constant 0 : index
    %c0_4 = arith.constant 0 : index
    %3 = vector.load %arg4[%c0_3, %c0_4] : memref<1x128xf32, #tpu.memory_space<vmem>>, vector<1x128xf32>
    %4 = vector.broadcast %3 : vector<1x128xf32> to vector<8x128xf32>
    %5 = arith.addf %2, %4 : vector<8x128xf32>
    %cst_5 = arith.constant 0.000000e+00 : f32
    %6 = vector.broadcast %cst_5 : f32 to vector<8x128xf32>
    %7 = arith.maximumf %5, %6 : vector<8x128xf32>
    %c0_6 = arith.constant 0 : index
    %c0_7 = arith.constant 0 : index
    %8 = vector.load %arg5[%c0_6, %c0_7] : memref<128x128xf32, #tpu.memory_space<vmem>>, vector<128x128xf32>
    %cst_8 = arith.constant dense<0.000000e+00> : vector<8x128xf32>
    %9 = tpu.matmul %7, %8, %cst_8 {dimension_numbers = #tpu.dot_dimension_numbers<[1], [0], [0], [1], [0, 0, 1, 1], [], []>} : vector<8x128xf32>, vector<128x128xf32>, vector<8x128xf32> -> vector<8x128xf32>
    %c0_9 = arith.constant 0 : index
    %c0_10 = arith.constant 0 : index
    %10 = vector.load %arg6[%c0_9, %c0_10] : memref<1x128xf32, #tpu.memory_space<vmem>>, vector<1x128xf32>
    %11 = vector.broadcast %10 : vector<1x128xf32> to vector<8x128xf32>
    %12 = arith.addf %9, %11 : vector<8x128xf32>
    %c0_11 = arith.constant 0 : index
    %c0_12 = arith.constant 0 : index
    %13 = vector.load %arg2[%c0_11, %c0_12] : memref<8x128xf32, #tpu.memory_space<vmem>>, vector<8x128xf32>
    %14 = arith.mulf %12, %13 : vector<8x128xf32>
    %c0_13 = arith.constant 0 : index
    %c0_14 = arith.constant 0 : index
    %15 = vector.load %arg7[%c0_13, %c0_14] : memref<8x128xf32, #tpu.memory_space<vmem>>, vector<8x128xf32>
    tpu.vector_store %arg7[%c0_13, %c0_14], %14 {strides = array<i32>} : memref<8x128xf32, #tpu.memory_space<vmem>>, vector<8x128xf32>,
    return
  }
  func.func @transform_0(%arg0: i32) -> (i32, i32) {
    %c0_i32 = arith.constant 0 : i32
    %c0_i32_0 = arith.constant 0 : i32
    return %arg0, %c0_i32 : i32, i32
  }
  func.func @transform_1(%arg0: i32) -> (i32, i32) {
    %c0_i32 = arith.constant 0 : i32
    %c0_i32_0 = arith.constant 0 : i32
    return %arg0, %c0_i32 : i32, i32
  }
  func.func @transform_2(%arg0: i32) -> (i32, i32) {
    %c0_i32 = arith.constant 0 : i32
    %c0_i32_0 = arith.constant 0 : i32
    %c0_i32_1 = arith.constant 0 : i32
    return %c0_i32, %c0_i32_0 : i32, i32
  }
  func.func @transform_3(%arg0: i32) -> (i32, i32) {
    %c0_i32 = arith.constant 0 : i32
    %c0_i32_0 = arith.constant 0 : i32
    %c0_i32_1 = arith.constant 0 : i32
    return %c0_i32, %c0_i32_0 : i32, i32
  }
  func.func @transform_4(%arg0: i32) -> (i32, i32) {
    %c0_i32 = arith.constant 0 : i32
    %c0_i32_0 = arith.constant 0 : i32
    %c0_i32_1 = arith.constant 0 : i32
    return %c0_i32, %c0_i32_0 : i32, i32
  }
  func.func @transform_5(%arg0: i32) -> (i32, i32) {
    %c0_i32 = arith.constant 0 : i32
    %c0_i32_0 = arith.constant 0 : i32
    %c0_i32_1 = arith.constant 0 : i32
    return %c0_i32, %c0_i32_0 : i32, i32
  }
  func.func @transform_6(%arg0: i32) -> (i32, i32) {
    %c0_i32 = arith.constant 0 : i32
    %c0_i32_0 = arith.constant 0 : i32
    return %arg0, %c0_i32 : i32, i32
  }
}

module attributes {stable_mosaic.version = 11 : i64} {
  func.func @kernel(%arg0: i32, %arg1: memref<8x128xf32, #tpu.memory_space<vmem>>, %arg2: memref<8x128xf32, #tpu.memory_space<vmem>>, %arg3: memref<128x128xf32, #tpu.memory_space<vmem>>, %arg4: memref<1x128xf32, #tpu.memory_space<vmem>>, %arg5: memref<128x128xf32, #tpu.memory_space<vmem>>, %arg6: memref<1x128xf32, #tpu.memory_space<vmem>>, %arg7: memref<8x128xf32, #tpu.memory_space<vmem>>) attributes {dimension_semantics = [#tpu.dimension_semantics<parallel>], iteration_bounds = array<i64: 1>, scalar_prefetch = 0 : i64, scratch_operands = 0 : i64, tpu.core_type = #tpu.core_type<tc>, window_params = [{transform_indices = @transform_0, window_bounds = array<i64: 8, 128>}, {transform_indices = @transform_1, window_bounds = array<i64: 8, 128>}, {pipeline_mode = #tpu.pipeline_mode<synchronous>, transform_indices = @transform_2, window_bounds = array<i64: 128, 128>}, {pipeline_mode = #tpu.pipeline_mode<synchronous>, transform_indices = @transform_3, window_bounds = array<i64: 1, 128>}, {pipeline_mode = #tpu.pipeline_mode<synchronous>, transform_indices = @transform_4, window_bounds = array<i64: 128, 128>}, {pipeline_mode = #tpu.pipeline_mode<synchronous>, transform_indices = @transform_5, window_bounds = array<i64: 1, 128>}, {transform_indices = @transform_6, window_bounds = array<i64: 8, 128>}]} {
    %c0 = arith.constant 0 : index
    %c0_0 = arith.constant 0 : index
    %0 = vector.load %arg1[%c0, %c0_0] : memref<8x128xf32, #tpu.memory_space<vmem>>, vector<8x128xf32>
    %c0_1 = arith.constant 0 : index
    %c0_2 = arith.constant 0 : index
    %1 = vector.load %arg3[%c0_1, %c0_2] : memref<128x128xf32, #tpu.memory_space<vmem>>, vector<128x128xf32>
    %cst = arith.constant dense<0.000000e+00> : vector<8x128xf32>
    %2 = tpu.matmul %0, %1, %cst {dimension_numbers = #tpu.dot_dimension_numbers<[1], [0], [0], [1], [0, 0, 1, 1], [], []>} : vector<8x128xf32>, vector<128x128xf32>, vector<8x128xf32> -> vector<8x128xf32>
    %c0_3 = arith.constant 0 : index
    %c0_4 = arith.constant 0 : index
    %3 = vector.load %arg4[%c0_3, %c0_4] : memref<1x128xf32, #tpu.memory_space<vmem>>, vector<1x128xf32>
    %4 = vector.broadcast %3 : vector<1x128xf32> to vector<8x128xf32>
    %5 = arith.addf %2, %4 : vector<8x128xf32>
    %cst_5 = arith.constant 0.000000e+00 : f32
    %6 = vector.broadcast %cst_5 : f32 to vector<8x128xf32>
    %7 = arith.maximumf %5, %6 : vector<8x128xf32>
    %c0_6 = arith.constant 0 : index
    %c0_7 = arith.constant 0 : index
    %8 = vector.load %arg5[%c0_6, %c0_7] : memref<128x128xf32, #tpu.memory_space<vmem>>, vector<128x128xf32>
    %cst_8 = arith.constant dense<0.000000e+00> : vector<8x128xf32>
    %9 = tpu.matmul %7, %8, %cst_8 {dimension_numbers = #tpu.dot_dimension_numbers<[1], [0], [0], [1], [0, 0, 1, 1], [], []>} : vector<8x128xf32>, vector<128x128xf32>, vector<8x128xf32> -> vector<8x128xf32>
    %c0_9 = arith.constant 0 : index
    %c0_10 = arith.constant 0 : index
    %10 = vector.load %arg6[%c0_9, %c0_10] : memref<1x128xf32, #tpu.memory_space<vmem>>, vector<1x128xf32>
    %11 = vector.broadcast %10 : vector<1x128xf32> to vector<8x128xf32>
    %12 = arith.addf %9, %11 : vector<8x128xf32>
    %c0_11 = arith.constant 0 : index
    %c0_12 = arith.constant 0 : index
    %13 = vector.load %arg2[%c0_11, %c0_12] : memref<8x128xf32, #tpu.memory_space<vmem>>, vector<8x128xf32>
    %14 = arith.mulf %12, %13 : vector<8x128xf32>
    %c0_13 = arith.constant 0 : index
    %c0_14 = arith.constant 0 : index
    %15 = vector.load %arg7[%c0_13, %c0_14] : memref<8x128xf32, #tpu.memory_space<vmem>>, vector<8x128xf32>
    tpu.vector_store %arg7[%c0_13, %c0_14], %14 {strides = array<i32>} : memref<8x128xf32, #tpu.memory_space<vmem>>, vector<8x128xf32>,
    return
  }
  func.func @transform_0(%arg0: i32) -> (i32, i32) {
    %c0_i32 = arith.constant 0 : i32
    %c0_i32_0 = arith.constant 0 : i32
    return %arg0, %c0_i32 : i32, i32
  }
  func.func @transform_1(%arg0: i32) -> (i32, i32) {
    %c0_i32 = arith.constant 0 : i32
    %c0_i32_0 = arith.constant 0 : i32
    return %arg0, %c0_i32 : i32, i32
  }
  func.func @transform_2(%arg0: i32) -> (i32, i32) {
    %c0_i32 = arith.constant 0 : i32
    %c0_i32_0 = arith.constant 0 : i32
    %c0_i32_1 = arith.constant 0 : i32
    return %c0_i32, %c0_i32_0 : i32, i32
  }
  func.func @transform_3(%arg0: i32) -> (i32, i32) {
    %c0_i32 = arith.constant 0 : i32
    %c0_i32_0 = arith.constant 0 : i32
    %c0_i32_1 = arith.constant 0 : i32
    return %c0_i32, %c0_i32_0 : i32, i32
  }
  func.func @transform_4(%arg0: i32) -> (i32, i32) {
    %c0_i32 = arith.constant 0 : i32
    %c0_i32_0 = arith.constant 0 : i32
    %c0_i32_1 = arith.constant 0 : i32
    return %c0_i32, %c0_i32_0 : i32, i32
  }
  func.func @transform_5(%arg0: i32) -> (i32, i32) {
    %c0_i32 = arith.constant 0 : i32
    %c0_i32_0 = arith.constant 0 : i32
    %c0_i32_1 = arith.constant 0 : i32
    return %c0_i32, %c0_i32_0 : i32, i32
  }
  func.func @transform_6(%arg0: i32) -> (i32, i32) {
    %c0_i32 = arith.constant 0 : i32
    %c0_i32_0 = arith.constant 0 : i32
    return %arg0, %c0_i32 : i32, i32
  }
}

</mosaic_0001>

<llo_original>
// kernel: tpu_custom_call.1
$region0: #{tpu_custom_call.1}
  #allocation0 [shape = 'u32[]', space=smem, size = 0x4, offset = 0x4, fixed_abs, tag = 'smem constant byte address 0x4 - core index']
  #allocation1 [shape = 'u32[72,128]{1,0:T(1,128)}', space=vmem, size = 0x9000, scoped, tag = 'internal scratch']
  %s0 = inlined_call_operand.hbm [shape: f32[8,128], index: 0, kind: input, shape index: {}]
  %s1 = inlined_call_operand.hbm [shape: f32[8,128], index: 1, kind: input, shape index: {}]
  %s2 = inlined_call_operand.hbm [shape: f32[128,128], index: 2, kind: input, shape index: {}]
  %s3 = inlined_call_operand.vmem [shape: f32[1,128], index: 3, kind: input, shape index: {}]
  %s4 = inlined_call_operand.hbm [shape: f32[128,128], index: 4, kind: input, shape index: {}]
  %s5 = inlined_call_operand.vmem [shape: f32[1,128], index: 5, kind: input, shape index: {}]
  %s6 = inlined_call_operand.hbm [shape: f32[8,128], index: 6, kind: output, shape index: {}]
  %s7 = sld [smem:[#allocation0]]
  $region50: #{tpu_custom_call.1} parent=0
    _
  %s9 = ssub.s32 1, %s7
  %s10 = scalar_select 0, %s9, %s7
  $region1: #{tpu_custom_call.1} parent=0
    #allocation2 [shape = 'u8[4096]{0}', space=vmem, size = 0x1000, scoped, tag = 'input window, operand 0, single buffered']
    #allocation3 [shape = 's32[1]{0}', space=sflag, size = 0x4, scoped, tag = 'scoped memory for tpu_custom_call.1']
    #allocation4 [shape = 's32[1]{0}', space=sflag, size = 0x4, scoped, tag = 'scoped memory for tpu_custom_call.1']
    #allocation5 [shape = 'u8[4096]{0}', space=vmem, size = 0x1000, scoped, tag = 'input window, operand 1, single buffered']
    #allocation6 [shape = 's32[1]{0}', space=sflag, size = 0x4, scoped, tag = 'scoped memory for tpu_custom_call.1']
    #allocation7 [shape = 'u8[65536]{0}', space=vmem, size = 0x10000, scoped, tag = 'input window, operand 2, single buffered']
    #allocation8 [shape = 'u8[65536]{0}', space=vmem, size = 0x10000, scoped, tag = 'input window, operand 4, single buffered']
    #allocation9 [shape = 's32[1]{0}', space=sflag, size = 0x4, scoped, tag = 'scoped memory for tpu_custom_call.1']
    #allocation10 [shape = 'u8[4096]{0}', space=vmem, size = 0x1000, scoped, tag = 'output window, operand 0, single buffered']
    %11 = vsyncpa [#allocation3], 0
    %12 = vsyncpa [#allocation6], 0
    %13 = vsyncpa [#allocation9], 0
    %14 = vsyncpa [#allocation4], 0
    // Predicated region
    $region2: #{tpu_custom_call.1} parent=1 // pred_check
      _
    $region3: #{tpu_custom_call.1} parent=1 // pred_check_branch
      %16 = sbr.rel (0) target = $region5
    $region4: #{tpu_custom_call.1} parent=1 // pred_region
      %18 = vsyncadd [#allocation3], 0
      %s20 = sshll.u32 %s0, 4
      %s21 = int_to_ptr.hbm [resolvable:$true] %s20
      %s22 = sshll.u32 [#allocation2], 4
      %s23 = int_to_ptr.vmem [resolvable:$true] %s22
      %25 = dma.hbm_to_vmem [thread:$0]  %s21, 128, %s23, [#allocation3]
    $region5: #{tpu_custom_call.1} parent=1 // pred_fallthru
      _
    // Predicated region
    $region6: #{tpu_custom_call.1} parent=1 // pred_check
      _
    $region7: #{tpu_custom_call.1} parent=1 // pred_check_branch
      %27 = sbr.rel (0) target = $region9
    $region8: #{tpu_custom_call.1} parent=1 // pred_region
      %29 = vsyncadd [#allocation6], 0
      %s31 = sshll.u32 %s1, 4
      %s32 = int_to_ptr.hbm [resolvable:$true] %s31
      %s33 = sshll.u32 [#allocation5], 4
      %s34 = int_to_ptr.vmem [resolvable:$true] %s33
      %36 = dma.hbm_to_vmem [thread:$0]  %s32, 128, %s34, [#allocation6]
    $region9: #{tpu_custom_call.1} parent=1 // pred_fallthru
      _
    // Predicated region
    $region10: #{tpu_custom_call.1} parent=1 // pred_check
      _
    $region11: #{tpu_custom_call.1} parent=1 // pred_check_branch
      %38 = sbr.rel (0) target = $region13
    $region12: #{tpu_custom_call.1} parent=1 // pred_region
      %40 = vsyncadd [#allocation6], 0
      %s41 = sshll.u32 %s2, 4
      %s42 = int_to_ptr.hbm [resolvable:$true] %s41
      %s43 = sshll.u32 [#allocation7], 4
      %s44 = int_to_ptr.vmem [resolvable:$true] %s43
      %49 = dma.hbm_to_vmem [thread:$0]  %s42, 2048, %s44, [#allocation6], 128, 128, 8
    $region13: #{tpu_custom_call.1} parent=1 // pred_fallthru
      _
    // Predicated region
    $region14: #{tpu_custom_call.1} parent=1 // pred_check
      _
    $region15: #{tpu_custom_call.1} parent=1 // pred_check_branch
      %51 = sbr.rel (0) target = $region17
    $region16: #{tpu_custom_call.1} parent=1 // pred_region
      _
    $region17: #{tpu_custom_call.1} parent=1 // pred_fallthru
      _
    // Predicated region
    $region18: #{tpu_custom_call.1} parent=1 // pred_check
      _
    $region19: #{tpu_custom_call.1} parent=1 // pred_check_branch
      %53 = sbr.rel (0) target = $region21
    $region20: #{tpu_custom_call.1} parent=1 // pred_region
      %55 = vsyncadd [#allocation9], 0
      %s56 = sshll.u32 %s4, 4
      %s57 = int_to_ptr.hbm [resolvable:$true] %s56
      %s58 = sshll.u32 [#allocation8], 4
      %s59 = int_to_ptr.vmem [resolvable:$true] %s58
      %64 = dma.hbm_to_vmem [thread:$0]  %s57, 2048, %s59, [#allocation9], 128, 128, 8
    $region21: #{tpu_custom_call.1} parent=1 // pred_fallthru
      _
    // Predicated region
    $region22: #{tpu_custom_call.1} parent=1 // pred_check
      _
    $region23: #{tpu_custom_call.1} parent=1 // pred_check_branch
      %66 = sbr.rel (0) target = $region25
    $region24: #{tpu_custom_call.1} parent=1 // pred_region
      _
    $region25: #{tpu_custom_call.1} parent=1 // pred_fallthru
      _
    // Predicated region
    $region26: #{tpu_custom_call.1} parent=1 // pred_check
      _
    $region27: #{tpu_custom_call.1} parent=1 // pred_check_branch
      %68 = sbr.rel (0) target = $region29
    $region28: #{tpu_custom_call.1} parent=1 // pred_region
      %70 = dma.done [#allocation3], 128
    $region29: #{tpu_custom_call.1} parent=1 // pred_fallthru
      _
    // Predicated region
    $region30: #{tpu_custom_call.1} parent=1 // pred_check
      _
    $region31: #{tpu_custom_call.1} parent=1 // pred_check_branch
      %72 = sbr.rel (0) target = $region33
    $region32: #{tpu_custom_call.1} parent=1 // pred_region
      %74 = dma.done [#allocation6], 128
    $region33: #{tpu_custom_call.1} parent=1 // pred_fallthru
      _
    // Predicated region
    $region34: #{tpu_custom_call.1} parent=1 // pred_check
      _
    $region35: #{tpu_custom_call.1} parent=1 // pred_check_branch
      %76 = sbr.rel (0) target = $region37
    $region36: #{tpu_custom_call.1} parent=1 // pred_region
      %78 = dma.done [#allocation6], 2048
    $region37: #{tpu_custom_call.1} parent=1 // pred_fallthru
      _
    // Predicated region
    $region38: #{tpu_custom_call.1} parent=1 // pred_check
      _
    $region39: #{tpu_custom_call.1} parent=1 // pred_check_branch
      %80 = sbr.rel (0) target = $region41
    $region40: #{tpu_custom_call.1} parent=1 // pred_region
      %82 = dma.done [#allocation9], 2048
    $region41: #{tpu_custom_call.1} parent=1 // pred_fallthru
      _
    %v83 = vld [vmem:[#allocation2] sm:$0xff]
    %v84 = vld [vmem:[#allocation7] sm:$0xff]
    %v85 = vld [vmem:[#allocation7 + $0x8] sm:$0xff]
    %v86 = vld [vmem:[#allocation7 + $0x10] sm:$0xff]
    %v87 = vld [vmem:[#allocation7 + $0x18] sm:$0xff]
    %v88 = vld [vmem:[#allocation7 + $0x20] sm:$0xff]
    %v89 = vld [vmem:[#allocation7 + $0x28] sm:$0xff]
    %v90 = vld [vmem:[#allocation7 + $0x30] sm:$0xff]
    %v91 = vld [vmem:[#allocation7 + $0x38] sm:$0xff]
    %v92 = vld [vmem:[#allocation7 + $0x40] sm:$0xff]
    %v93 = vld [vmem:[#allocation7 + $0x48] sm:$0xff]
    %v94 = vld [vmem:[#allocation7 + $0x50] sm:$0xff]
    %v95 = vld [vmem:[#allocation7 + $0x58] sm:$0xff]
    %v96 = vld [vmem:[#allocation7 + $0x60] sm:$0xff]
    %v97 = vld [vmem:[#allocation7 + $0x68] sm:$0xff]
    %v98 = vld [vmem:[#allocation7 + $0x70] sm:$0xff]
    %v99 = vld [vmem:[#allocation7 + $0x78] sm:$0xff]
    %v100 = vld [vmem:[%s3] sm:$0x1]
    %v102 = vperm.slane %v100, 0
    %104 = vmatpush.msra.mxu0 %v99
    %105 = vmatpush.msra.mxu0 %v98
    %106 = vmatpush.msra.mxu0 %v97
    %107 = vmatpush.msra.mxu0 %v96
    %108 = vmatpush.msra.mxu0 %v95
    %109 = vmatpush.msra.mxu0 %v94
    %110 = vmatpush.msra.mxu0 %v93
    %111 = vmatpush.msra.mxu0 %v92
    %112 = vmatpush.msra.mxu0 %v91
    %113 = vmatpush.msra.mxu0 %v90
    %114 = vmatpush.msra.mxu0 %v89
    %115 = vmatpush.msra.mxu0 %v88
    %116 = vmatpush.msra.mxu0 %v87
    %117 = vmatpush.msra.mxu0 %v86
    %118 = vmatpush.msra.mxu0 %v85
    %119 = vmatpush.msra.mxu0 %v84
    %120 = vmatmul.f32.gmra.mxu0 %v83
    %v121 = vpop.f32.mrf.mxu0
    %v122 = vadd.f32 %v102, %v121
    %123 = vdwg.mxu0
    %v124 = vmax.f32 %v122, 0.0
    %v125 = vld [vmem:[#allocation8] sm:$0xff]
    %v126 = vld [vmem:[#allocation8 + $0x8] sm:$0xff]
    %v127 = vld [vmem:[#allocation8 + $0x10] sm:$0xff]
    %v128 = vld [vmem:[#allocation8 + $0x18] sm:$0xff]
    %v129 = vld [vmem:[#allocation8 + $0x20] sm:$0xff]
    %v130 = vld [vmem:[#allocation8 + $0x28] sm:$0xff]
    %v131 = vld [vmem:[#allocation8 + $0x30] sm:$0xff]
    %v132 = vld [vmem:[#allocation8 + $0x38] sm:$0xff]
    %v133 = vld [vmem:[#allocation8 + $0x40] sm:$0xff]
    %v134 = vld [vmem:[#allocation8 + $0x48] sm:$0xff]
    %v135 = vld [vmem:[#allocation8 + $0x50] sm:$0xff]
    %v136 = vld [vmem:[#allocation8 + $0x58] sm:$0xff]
    %v137 = vld [vmem:[#allocation8 + $0x60] sm:$0xff]
    %v138 = vld [vmem:[#allocation8 + $0x68] sm:$0xff]
    %v139 = vld [vmem:[#allocation8 + $0x70] sm:$0xff]
    %v140 = vld [vmem:[#allocation8 + $0x78] sm:$0xff]
    %v141 = vld [vmem:[%s5] sm:$0x1]
    %v143 = vperm.slane %v141, 0
    %145 = vmatpush.msra.mxu0 %v140
    %146 = vmatpush.msra.mxu0 %v139
    %147 = vmatpush.msra.mxu0 %v138
    %148 = vmatpush.msra.mxu0 %v137
    %149 = vmatpush.msra.mxu0 %v136
    %150 = vmatpush.msra.mxu0 %v135
    %151 = vmatpush.msra.mxu0 %v134
    %152 = vmatpush.msra.mxu0 %v133
    %153 = vmatpush.msra.mxu0 %v132
    %154 = vmatpush.msra.mxu0 %v131
    %155 = vmatpush.msra.mxu0 %v130
    %156 = vmatpush.msra.mxu0 %v129
    %157 = vmatpush.msra.mxu0 %v128
    %158 = vmatpush.msra.mxu0 %v127
    %159 = vmatpush.msra.mxu0 %v126
    %160 = vmatpush.msra.mxu0 %v125
    %161 = vmatmul.f32.gmra.mxu0 %v124
    %v162 = vpop.f32.mrf.mxu0
    %v163 = vadd.f32 %v143, %v162
    %164 = vdwg.mxu0
    %v165 = vld [vmem:[#allocation5] sm:$0xff]
    %v166 = vmul.f32 %v163, %v165
    %167 = vst [vmem:[#allocation10] sm:$0xff] %v166
    // Predicated region
    $region42: #{tpu_custom_call.1} parent=1 // pred_check
      _
    $region43: #{tpu_custom_call.1} parent=1 // pred_check_branch
      %169 = sbr.rel (0) target = $region45
    $region44: #{tpu_custom_call.1} parent=1 // pred_region
      %171 = vsyncadd [#allocation4], 0
      %s173 = sshll.u32 [#allocation10], 4
      %s174 = int_to_ptr.vmem [resolvable:$true] %s173
      %s175 = sshll.u32 %s6, 4
      %s176 = int_to_ptr.hbm [resolvable:$true] %s175
      %178 = dma.vmem_to_hbm [thread:$0]  %s174, 128, %s176, [#allocation4]
    $region45: #{tpu_custom_call.1} parent=1 // pred_fallthru
      _
    // Predicated region
    $region46: #{tpu_custom_call.1} parent=1 // pred_check
      _
    $region47: #{tpu_custom_call.1} parent=1 // pred_check_branch
      %180 = sbr.rel (0) target = $region49
    $region48: #{tpu_custom_call.1} parent=1 // pred_region
      %182 = dma.done [#allocation4], 128
    $region49: #{tpu_custom_call.1} parent=1 // pred_fallthru
      _
    %183 = vsyncpa [#allocation3], 1
    %184 = vsyncpa [#allocation6], 1
    %185 = vsyncpa [#allocation9], 1
    %186 = vsyncpa [#allocation4], 1

// kernel: tpu_custom_call.1
$region0: #{tpu_custom_call.1}
  #allocation0 [shape = 'u32[]', space=smem, size = 0x4, offset = 0x4, fixed_abs, tag = 'smem constant byte address 0x4 - core index']
  #allocation1 [shape = 'u32[72,128]{1,0:T(1,128)}', space=vmem, size = 0x9000, scoped, tag = 'internal scratch']
  %s0 = inlined_call_operand.hbm [shape: f32[8,128], index: 0, kind: input, shape index: {}]
  %s1 = inlined_call_operand.hbm [shape: f32[8,128], index: 1, kind: input, shape index: {}]
  %s2 = inlined_call_operand.hbm [shape: f32[128,128], index: 2, kind: input, shape index: {}]
  %s3 = inlined_call_operand.vmem [shape: f32[1,128], index: 3, kind: input, shape index: {}]
  %s4 = inlined_call_operand.hbm [shape: f32[128,128], index: 4, kind: input, shape index: {}]
  %s5 = inlined_call_operand.vmem [shape: f32[1,128], index: 5, kind: input, shape index: {}]
  %s6 = inlined_call_operand.hbm [shape: f32[8,128], index: 6, kind: output, shape index: {}]
  %s7 = sld [smem:[#allocation0]]
  $region50: #{tpu_custom_call.1} parent=0
    _
  %s9 = ssub.s32 1, %s7
  %s10 = scalar_select 0, %s9, %s7
  $region1: #{tpu_custom_call.1} parent=0
    #allocation2 [shape = 'u8[4096]{0}', space=vmem, size = 0x1000, scoped, tag = 'input window, operand 0, single buffered']
    #allocation3 [shape = 's32[1]{0}', space=sflag, size = 0x4, scoped, tag = 'scoped memory for tpu_custom_call.1']
    #allocation4 [shape = 's32[1]{0}', space=sflag, size = 0x4, scoped, tag = 'scoped memory for tpu_custom_call.1']
    #allocation5 [shape = 'u8[4096]{0}', space=vmem, size = 0x1000, scoped, tag = 'input window, operand 1, single buffered']
    #allocation6 [shape = 's32[1]{0}', space=sflag, size = 0x4, scoped, tag = 'scoped memory for tpu_custom_call.1']
    #allocation7 [shape = 'u8[65536]{0}', space=vmem, size = 0x10000, scoped, tag = 'input window, operand 2, single buffered']
    #allocation8 [shape = 'u8[65536]{0}', space=vmem, size = 0x10000, scoped, tag = 'input window, operand 4, single buffered']
    #allocation9 [shape = 's32[1]{0}', space=sflag, size = 0x4, scoped, tag = 'scoped memory for tpu_custom_call.1']
    #allocation10 [shape = 'u8[4096]{0}', space=vmem, size = 0x1000, scoped, tag = 'output window, operand 0, single buffered']
    %11 = vsyncpa [#allocation3], 0
    %12 = vsyncpa [#allocation6], 0
    %13 = vsyncpa [#allocation9], 0
    %14 = vsyncpa [#allocation4], 0
    // Predicated region
    $region2: #{tpu_custom_call.1} parent=1 // pred_check
      _
    $region3: #{tpu_custom_call.1} parent=1 // pred_check_branch
      %16 = sbr.rel (0) target = $region5
    $region4: #{tpu_custom_call.1} parent=1 // pred_region
      %18 = vsyncadd [#allocation3], 0
      %s20 = sshll.u32 %s0, 4
      %s21 = int_to_ptr.hbm [resolvable:$true] %s20
      %s22 = sshll.u32 [#allocation2], 4
      %s23 = int_to_ptr.vmem [resolvable:$true] %s22
      %25 = dma.hbm_to_vmem [thread:$0]  %s21, 128, %s23, [#allocation3]
    $region5: #{tpu_custom_call.1} parent=1 // pred_fallthru
      _
    // Predicated region
    $region6: #{tpu_custom_call.1} parent=1 // pred_check
      _
    $region7: #{tpu_custom_call.1} parent=1 // pred_check_branch
      %27 = sbr.rel (0) target = $region9
    $region8: #{tpu_custom_call.1} parent=1 // pred_region
      %29 = vsyncadd [#allocation6], 0
      %s31 = sshll.u32 %s1, 4
      %s32 = int_to_ptr.hbm [resolvable:$true] %s31
      %s33 = sshll.u32 [#allocation5], 4
      %s34 = int_to_ptr.vmem [resolvable:$true] %s33
      %36 = dma.hbm_to_vmem [thread:$0]  %s32, 128, %s34, [#allocation6]
    $region9: #{tpu_custom_call.1} parent=1 // pred_fallthru
      _
    // Predicated region
    $region10: #{tpu_custom_call.1} parent=1 // pred_check
      _
    $region11: #{tpu_custom_call.1} parent=1 // pred_check_branch
      %38 = sbr.rel (0) target = $region13
    $region12: #{tpu_custom_call.1} parent=1 // pred_region
      %40 = vsyncadd [#allocation6], 0
      %s41 = sshll.u32 %s2, 4
      %s42 = int_to_ptr.hbm [resolvable:$true] %s41
      %s43 = sshll.u32 [#allocation7], 4
      %s44 = int_to_ptr.vmem [resolvable:$true] %s43
      %49 = dma.hbm_to_vmem [thread:$0]  %s42, 2048, %s44, [#allocation6], 128, 128, 8
    $region13: #{tpu_custom_call.1} parent=1 // pred_fallthru
      _
    // Predicated region
    $region14: #{tpu_custom_call.1} parent=1 // pred_check
      _
    $region15: #{tpu_custom_call.1} parent=1 // pred_check_branch
      %51 = sbr.rel (0) target = $region17
    $region16: #{tpu_custom_call.1} parent=1 // pred_region
      _
    $region17: #{tpu_custom_call.1} parent=1 // pred_fallthru
      _
    // Predicated region
    $region18: #{tpu_custom_call.1} parent=1 // pred_check
      _
    $region19: #{tpu_custom_call.1} parent=1 // pred_check_branch
      %53 = sbr.rel (0) target = $region21
    $region20: #{tpu_custom_call.1} parent=1 // pred_region
      %55 = vsyncadd [#allocation9], 0
      %s56 = sshll.u32 %s4, 4
      %s57 = int_to_ptr.hbm [resolvable:$true] %s56
      %s58 = sshll.u32 [#allocation8], 4
      %s59 = int_to_ptr.vmem [resolvable:$true] %s58
      %64 = dma.hbm_to_vmem [thread:$0]  %s57, 2048, %s59, [#allocation9], 128, 128, 8
    $region21: #{tpu_custom_call.1} parent=1 // pred_fallthru
      _
    // Predicated region
    $region22: #{tpu_custom_call.1} parent=1 // pred_check
      _
    $region23: #{tpu_custom_call.1} parent=1 // pred_check_branch
      %66 = sbr.rel (0) target = $region25
    $region24: #{tpu_custom_call.1} parent=1 // pred_region
      _
    $region25: #{tpu_custom_call.1} parent=1 // pred_fallthru
      _
    // Predicated region
    $region26: #{tpu_custom_call.1} parent=1 // pred_check
      _
    $region27: #{tpu_custom_call.1} parent=1 // pred_check_branch
      %68 = sbr.rel (0) target = $region29
    $region28: #{tpu_custom_call.1} parent=1 // pred_region
      %70 = dma.done [#allocation3], 128
    $region29: #{tpu_custom_call.1} parent=1 // pred_fallthru
      _
    // Predicated region
    $region30: #{tpu_custom_call.1} parent=1 // pred_check
      _
    $region31: #{tpu_custom_call.1} parent=1 // pred_check_branch
      %72 = sbr.rel (0) target = $region33
    $region32: #{tpu_custom_call.1} parent=1 // pred_region
      %74 = dma.done [#allocation6], 128
    $region33: #{tpu_custom_call.1} parent=1 // pred_fallthru
      _
    // Predicated region
    $region34: #{tpu_custom_call.1} parent=1 // pred_check
      _
    $region35: #{tpu_custom_call.1} parent=1 // pred_check_branch
      %76 = sbr.rel (0) target = $region37
    $region36: #{tpu_custom_call.1} parent=1 // pred_region
      %78 = dma.done [#allocation6], 2048
    $region37: #{tpu_custom_call.1} parent=1 // pred_fallthru
      _
    // Predicated region
    $region38: #{tpu_custom_call.1} parent=1 // pred_check
      _
    $region39: #{tpu_custom_call.1} parent=1 // pred_check_branch
      %80 = sbr.rel (0) target = $region41
    $region40: #{tpu_custom_call.1} parent=1 // pred_region
      %82 = dma.done [#allocation9], 2048
    $region41: #{tpu_custom_call.1} parent=1 // pred_fallthru
      _
    %v83 = vld [vmem:[#allocation2] sm:$0xff]
    %v84 = vld [vmem:[#allocation7] sm:$0xff]
    %v85 = vld [vmem:[#allocation7 + $0x8] sm:$0xff]
    %v86 = vld [vmem:[#allocation7 + $0x10] sm:$0xff]
    %v87 = vld [vmem:[#allocation7 + $0x18] sm:$0xff]
    %v88 = vld [vmem:[#allocation7 + $0x20] sm:$0xff]
    %v89 = vld [vmem:[#allocation7 + $0x28] sm:$0xff]
    %v90 = vld [vmem:[#allocation7 + $0x30] sm:$0xff]
    %v91 = vld [vmem:[#allocation7 + $0x38] sm:$0xff]
    %v92 = vld [vmem:[#allocation7 + $0x40] sm:$0xff]
    %v93 = vld [vmem:[#allocation7 + $0x48] sm:$0xff]
    %v94 = vld [vmem:[#allocation7 + $0x50] sm:$0xff]
    %v95 = vld [vmem:[#allocation7 + $0x58] sm:$0xff]
    %v96 = vld [vmem:[#allocation7 + $0x60] sm:$0xff]
    %v97 = vld [vmem:[#allocation7 + $0x68] sm:$0xff]
    %v98 = vld [vmem:[#allocation7 + $0x70] sm:$0xff]
    %v99 = vld [vmem:[#allocation7 + $0x78] sm:$0xff]
    %v100 = vld [vmem:[%s3] sm:$0x1]
    %v102 = vperm.slane %v100, 0
    %104 = vmatpush.msra.mxu0 %v99
    %105 = vmatpush.msra.mxu0 %v98
    %106 = vmatpush.msra.mxu0 %v97
    %107 = vmatpush.msra.mxu0 %v96
    %108 = vmatpush.msra.mxu0 %v95
    %109 = vmatpush.msra.mxu0 %v94
    %110 = vmatpush.msra.mxu0 %v93
    %111 = vmatpush.msra.mxu0 %v92
    %112 = vmatpush.msra.mxu0 %v91
    %113 = vmatpush.msra.mxu0 %v90
    %114 = vmatpush.msra.mxu0 %v89
    %115 = vmatpush.msra.mxu0 %v88
    %116 = vmatpush.msra.mxu0 %v87
    %117 = vmatpush.msra.mxu0 %v86
    %118 = vmatpush.msra.mxu0 %v85
    %119 = vmatpush.msra.mxu0 %v84
    %120 = vmatmul.f32.gmra.mxu0 %v83
    %v121 = vpop.f32.mrf.mxu0
    %v122 = vadd.f32 %v102, %v121
    %123 = vdwg.mxu0
    %v124 = vmax.f32 %v122, 0.0
    %v125 = vld [vmem:[#allocation8] sm:$0xff]
    %v126 = vld [vmem:[#allocation8 + $0x8] sm:$0xff]
    %v127 = vld [vmem:[#allocation8 + $0x10] sm:$0xff]
    %v128 = vld [vmem:[#allocation8 + $0x18] sm:$0xff]
    %v129 = vld [vmem:[#allocation8 + $0x20] sm:$0xff]
    %v130 = vld [vmem:[#allocation8 + $0x28] sm:$0xff]
    %v131 = vld [vmem:[#allocation8 + $0x30] sm:$0xff]
    %v132 = vld [vmem:[#allocation8 + $0x38] sm:$0xff]
    %v133 = vld [vmem:[#allocation8 + $0x40] sm:$0xff]
    %v134 = vld [vmem:[#allocation8 + $0x48] sm:$0xff]
    %v135 = vld [vmem:[#allocation8 + $0x50] sm:$0xff]
    %v136 = vld [vmem:[#allocation8 + $0x58] sm:$0xff]
    %v137 = vld [vmem:[#allocation8 + $0x60] sm:$0xff]
    %v138 = vld [vmem:[#allocation8 + $0x68] sm:$0xff]
    %v139 = vld [vmem:[#allocation8 + $0x70] sm:$0xff]
    %v140 = vld [vmem:[#allocation8 + $0x78] sm:$0xff]
    %v141 = vld [vmem:[%s5] sm:$0x1]
    %v143 = vperm.slane %v141, 0
    %145 = vmatpush.msra.mxu0 %v140
    %146 = vmatpush.msra.mxu0 %v139
    %147 = vmatpush.msra.mxu0 %v138
    %148 = vmatpush.msra.mxu0 %v137
    %149 = vmatpush.msra.mxu0 %v136
    %150 = vmatpush.msra.mxu0 %v135
    %151 = vmatpush.msra.mxu0 %v134
    %152 = vmatpush.msra.mxu0 %v133
    %153 = vmatpush.msra.mxu0 %v132
    %154 = vmatpush.msra.mxu0 %v131
    %155 = vmatpush.msra.mxu0 %v130
    %156 = vmatpush.msra.mxu0 %v129
    %157 = vmatpush.msra.mxu0 %v128
    %158 = vmatpush.msra.mxu0 %v127
    %159 = vmatpush.msra.mxu0 %v126
    %160 = vmatpush.msra.mxu0 %v125
    %161 = vmatmul.f32.gmra.mxu0 %v124
    %v162 = vpop.f32.mrf.mxu0
    %v163 = vadd.f32 %v143, %v162
    %164 = vdwg.mxu0
    %v165 = vld [vmem:[#allocation5] sm:$0xff]
    %v166 = vmul.f32 %v163, %v165
    %167 = vst [vmem:[#allocation10] sm:$0xff] %v166
    // Predicated region
    $region42: #{tpu_custom_call.1} parent=1 // pred_check
      _
    $region43: #{tpu_custom_call.1} parent=1 // pred_check_branch
      %169 = sbr.rel (0) target = $region45
    $region44: #{tpu_custom_call.1} parent=1 // pred_region
      %171 = vsyncadd [#allocation4], 0
      %s173 = sshll.u32 [#allocation10], 4
      %s174 = int_to_ptr.vmem [resolvable:$true] %s173
      %s175 = sshll.u32 %s6, 4
      %s176 = int_to_ptr.hbm [resolvable:$true] %s175
      %178 = dma.vmem_to_hbm [thread:$0]  %s174, 128, %s176, [#allocation4]
    $region45: #{tpu_custom_call.1} parent=1 // pred_fallthru
      _
    // Predicated region
    $region46: #{tpu_custom_call.1} parent=1 // pred_check
      _
    $region47: #{tpu_custom_call.1} parent=1 // pred_check_branch
      %180 = sbr.rel (0) target = $region49
    $region48: #{tpu_custom_call.1} parent=1 // pred_region
      %182 = dma.done [#allocation4], 128
    $region49: #{tpu_custom_call.1} parent=1 // pred_fallthru
      _
    %183 = vsyncpa [#allocation3], 1
    %184 = vsyncpa [#allocation6], 1
    %185 = vsyncpa [#allocation9], 1
    %186 = vsyncpa [#allocation4], 1

</llo_original>
